<compile_context>
chip_gen: v7x
topology: tpu7x:2x2x1
jax: 0.10.0
libtpu: 0.0.40
codegen_flags: <defaults>
</compile_context>

<pallas_src>
import functools

import jax
import jax.numpy as jnp
from jax import lax
from jax.experimental import pallas as pl
from jax.experimental.pallas import tpu as pltpu


# ------------------------------ fused kernel ------------------------------
def _channel_attention_kernel(x_ref, w1_ref, w2_ref, o_ref,
                              sum_ref, max_ref, *, inv_hw):
    """Grid = (N, num_spatial_tiles).

    x_ref : (1, C, T)   f32  -- spatial tile on the lane axis
    w1_ref: (C, Cr)     f32  -- fc1 weight (maps C -> C//r), no bias
    w2_ref: (Cr, C)     f32  -- fc2 weight (maps C//r -> C), no bias
    o_ref : (1, 1, C)   f32  -- sigmoid channel attention (lane-dense)
    sum_ref/max_ref: (C, 1) VMEM scratch, running spatial sum / max.
    """
    t = pl.program_id(1)
    nt = pl.num_programs(1)

    xb = x_ref[0]                                      # (C, T)
    psum = jnp.sum(xb, axis=1, keepdims=True)          # (C, 1)
    pmax = jnp.max(xb, axis=1, keepdims=True)          # (C, 1)

    @pl.when(t == 0)
    def _init():
        sum_ref[...] = psum
        max_ref[...] = pmax

    @pl.when(t > 0)
    def _accumulate():
        sum_ref[...] = sum_ref[...] + psum
        max_ref[...] = jnp.maximum(max_ref[...], pmax)

    @pl.when(t == nt - 1)
    def _finalize():
        # (C, 2): column 0 = AdaptiveAvgPool2d(1), column 1 = AdaptiveMaxPool2d(1)
        pooled = jnp.concatenate([sum_ref[...] * inv_hw, max_ref[...]], axis=1)
        # Shared MLP on both pooled vectors at once: contract the channel axis.
        h = lax.dot_general(pooled, w1_ref[...],
                            dimension_numbers=(((0,), (0,)), ((), ())),
                            preferred_element_type=jnp.float32)        # (2, Cr)
        h = jnp.maximum(h, 0.0)                                        # ReLU
        o2 = jnp.dot(h, w2_ref[...],
                     preferred_element_type=jnp.float32)               # (2, C)
        # sigmoid(fc2(relu(fc1(avg))) + fc2(relu(fc1(max))))
        o_ref[0] = jax.nn.sigmoid(o2[0:1, :] + o2[1:2, :])             # (1, C)


def _pick_spatial_tile(hw, c, itemsize=4, block_budget_bytes=4 << 20):
    """Largest multiple-of-128 divisor of H*W whose (C, T) block fits the budget."""
    if hw % 128 != 0:
        return hw                       # full-extent block (still legal)
    best = 128
    for t in range(128, hw + 1, 128):
        if hw % t == 0 and c * t * itemsize <= block_budget_bytes:
            best = t
    return best


def channel_attention(x_nchw, w1, w2, *, spatial_tile=None):
    """PyTorch ChannelAttention forward.

    x_nchw : (N, C, H, W) float32
    w1     : (C, C//r)  == torch fc1.weight[.., 0, 0].T  (bias-free)
    w2     : (C//r, C)  == torch fc2.weight[.., 0, 0].T  (bias-free)
    returns: (N, C, 1, 1) float32, sigmoid channel-attention weights.
    """
    N, C, H, W = x_nchw.shape
    hw = H * W
    Cr = w1.shape[1]
    x3 = x_nchw.reshape(N, C, hw)        # free reshape (contiguous dims), no HBM transpose
    w1 = w1.astype(jnp.float32)
    w2 = w2.astype(jnp.float32)

    T = spatial_tile if spatial_tile is not None else _pick_spatial_tile(hw, C)
    assert hw % T == 0, (hw, T)
    nt = hw // T

    out = pl.pallas_call(
        functools.partial(_channel_attention_kernel, inv_hw=1.0 / hw),
        grid=(N, nt),
        in_specs=[
            pl.BlockSpec((1, C, T), lambda n, t: (n, 0, t)),
            pl.BlockSpec((C, Cr), lambda n, t: (0, 0)),
            pl.BlockSpec((Cr, C), lambda n, t: (0, 0)),
        ],
        out_specs=pl.BlockSpec((1, 1, C), lambda n, t: (n, 0, 0)),
        out_shape=jax.ShapeDtypeStruct((N, 1, C), jnp.float32),
        scratch_shapes=[
            pltpu.VMEM((C, 1), jnp.float32),   # running spatial sum
            pltpu.VMEM((C, 1), jnp.float32),   # running spatial max
        ],
        compiler_params=pltpu.CompilerParams(
            dimension_semantics=("parallel", "arbitrary")),
    )(x3, w1, w2)

    # (N, 1, C) -> (N, C, 1, 1): pure reshape, matches nn.Module output layout.
    return out.reshape(N, C, 1, 1)


# ------------------------------ reference -------------------------------
def channel_attention_ref(x, w1, w2):
    avg = jnp.mean(x, axis=(2, 3))                 # (N, C)
    mx = jnp.max(x, axis=(2, 3))                   # (N, C)

    def mlp(v):
        return jnp.maximum(v @ w1, 0.0) @ w2

    out = jax.nn.sigmoid(mlp(avg) + mlp(mx))
    return out.reshape(x.shape[0], x.shape[1], 1, 1)


if __name__ == "__main__":
    key = jax.random.PRNGKey(0)
    kx, k1, k2 = jax.random.split(key, 3)

    N, C, H, W = 2, 64, 16, 16          # in_channels=64, reduction_ratio=16 -> Cr=4
    r = 16
    x = jax.random.normal(kx, (N, C, H, W), dtype=jnp.float32)
    w1 = (0.1 * jax.random.normal(k1, (C, C // r))).astype(jnp.float32)
    w2 = (0.1 * jax.random.normal(k2, (C // r, C))).astype(jnp.float32)

    y = jax.jit(channel_attention)(x, w1, w2)
    jax.block_until_ready(y)
    assert y.shape == (N, C, 1, 1), y.shape
    assert bool(jnp.all(jnp.isfinite(y)))

    ref = channel_attention_ref(x, w1, w2)
    assert bool(jnp.allclose(y, ref, atol=1e-5, rtol=1e-5)), \
        float(jnp.max(jnp.abs(y - ref)))

    # Also exercise the multi-tile spatial-accumulation path (2 tiles of 128).
    y2 = jax.jit(functools.partial(channel_attention, spatial_tile=128))(x, w1, w2)
    jax.block_until_ready(y2)
    assert bool(jnp.allclose(y2, ref, atol=1e-5, rtol=1e-5))

    print("KERNEL_OK")
</pallas_src>

<mosaic_0001>
module attributes {stable_mosaic.version = 11 : i64} {
  func.func @_channel_attention_kernel(%arg0: i32, %arg1: i32, %arg2: memref<1x64x256xf32, #tpu.memory_space<vmem>>, %arg3: memref<64x4xf32, #tpu.memory_space<vmem>>, %arg4: memref<4x64xf32, #tpu.memory_space<vmem>>, %arg5: memref<1x1x64xf32, #tpu.memory_space<vmem>>, %arg6: memref<64x1xf32, #tpu.memory_space<vmem>>, %arg7: memref<64x1xf32, #tpu.memory_space<vmem>>) attributes {dimension_semantics = [#tpu.dimension_semantics<parallel>, #tpu.dimension_semantics<arbitrary>], iteration_bounds = array<i64: 2, 1>, scalar_prefetch = 0 : i64, scratch_operands = 2 : i64, tpu.core_type = #tpu.core_type<tc>, window_params = [{transform_indices = @transform_0, window_bounds = array<i64: 1, 64, 256>}, {pipeline_mode = #tpu.pipeline_mode<synchronous>, transform_indices = @transform_1, window_bounds = array<i64: 64, 4>}, {pipeline_mode = #tpu.pipeline_mode<synchronous>, transform_indices = @transform_2, window_bounds = array<i64: 4, 64>}, {transform_indices = @transform_3, window_bounds = array<i64: 1, 1, 64>}]} {
    %c0 = arith.constant 0 : index
    %c0_0 = arith.constant 0 : index
    %c0_1 = arith.constant 0 : index
    %0 = vector.load %arg2[%c0, %c0_0, %c0_1] : memref<1x64x256xf32, #tpu.memory_space<vmem>>, vector<1x64x256xf32>
    %1 = vector.shape_cast %0 : vector<1x64x256xf32> to vector<64x256xf32>
    %cst = arith.constant dense<0.000000e+00> : vector<64xf32>
    %2 = vector.multi_reduction <add>, %1, %cst [1] : vector<64x256xf32> to vector<64xf32>
    %3 = vector.shape_cast %2 : vector<64xf32> to vector<64x1xf32>
    %cst_2 = arith.constant dense<0xFF800000> : vector<64xf32>
    %4 = vector.multi_reduction <maximumf>, %1, %cst_2 [1] : vector<64x256xf32> to vector<64xf32>
    %5 = vector.shape_cast %4 : vector<64xf32> to vector<64x1xf32>
    %c0_i32 = arith.constant 0 : i32
    %6 = arith.cmpi eq, %arg1, %c0_i32 : i32
    %7 = arith.extui %6 : i1 to i32
    %c0_i32_3 = arith.constant 0 : i32
    %8 = arith.cmpi ne, %7, %c0_i32_3 : i32
    scf.if %8 {
      %c0_8 = arith.constant 0 : index
      %c0_9 = arith.constant 0 : index
      %15 = vector.load %arg6[%c0_8, %c0_9] : memref<64x1xf32, #tpu.memory_space<vmem>>, vector<64x1xf32>
      tpu.vector_store %arg6[%c0_8, %c0_9], %3 {strides = array<i32>} : memref<64x1xf32, #tpu.memory_space<vmem>>, vector<64x1xf32>,
      %c0_10 = arith.constant 0 : index
      %c0_11 = arith.constant 0 : index
      %16 = vector.load %arg7[%c0_10, %c0_11] : memref<64x1xf32, #tpu.memory_space<vmem>>, vector<64x1xf32>
      tpu.vector_store %arg7[%c0_10, %c0_11], %5 {strides = array<i32>} : memref<64x1xf32, #tpu.memory_space<vmem>>, vector<64x1xf32>,
    } else {
    }
    %c0_i32_4 = arith.constant 0 : i32
    %9 = arith.cmpi sgt, %arg1, %c0_i32_4 : i32
    %10 = arith.extui %9 : i1 to i32
    %c0_i32_5 = arith.constant 0 : i32
    %11 = arith.cmpi ne, %10, %c0_i32_5 : i32
    scf.if %11 {
      %c0_8 = arith.constant 0 : index
      %c0_9 = arith.constant 0 : index
      %15 = vector.load %arg6[%c0_8, %c0_9] : memref<64x1xf32, #tpu.memory_space<vmem>>, vector<64x1xf32>
      %16 = arith.addf %15, %3 : vector<64x1xf32>
      %c0_10 = arith.constant 0 : index
      %c0_11 = arith.constant 0 : index
      %17 = vector.load %arg6[%c0_10, %c0_11] : memref<64x1xf32, #tpu.memory_space<vmem>>, vector<64x1xf32>
      tpu.vector_store %arg6[%c0_10, %c0_11], %16 {strides = array<i32>} : memref<64x1xf32, #tpu.memory_space<vmem>>, vector<64x1xf32>,
      %c0_12 = arith.constant 0 : index
      %c0_13 = arith.constant 0 : index
      %18 = vector.load %arg7[%c0_12, %c0_13] : memref<64x1xf32, #tpu.memory_space<vmem>>, vector<64x1xf32>
      %19 = arith.maximumf %18, %5 : vector<64x1xf32>
      %c0_14 = arith.constant 0 : index
      %c0_15 = arith.constant 0 : index
      %20 = vector.load %arg7[%c0_14, %c0_15] : memref<64x1xf32, #tpu.memory_space<vmem>>, vector<64x1xf32>
      tpu.vector_store %arg7[%c0_14, %c0_15], %19 {strides = array<i32>} : memref<64x1xf32, #tpu.memory_space<vmem>>, vector<64x1xf32>,
    } else {
    }
    %c0_i32_6 = arith.constant 0 : i32
    %12 = arith.cmpi eq, %arg1, %c0_i32_6 : i32
    %13 = arith.extui %12 : i1 to i32
    %c0_i32_7 = arith.constant 0 : i32
    %14 = arith.cmpi ne, %13, %c0_i32_7 : i32
    scf.if %14 {
      %c0_8 = arith.constant 0 : index
      %c0_9 = arith.constant 0 : index
      %15 = vector.load %arg6[%c0_8, %c0_9] : memref<64x1xf32, #tpu.memory_space<vmem>>, vector<64x1xf32>
      %cst_10 = arith.constant 3.906250e-03 : f32
      %16 = vector.broadcast %cst_10 : f32 to vector<64x1xf32>
      %17 = arith.mulf %15, %16 : vector<64x1xf32>
      %c0_11 = arith.constant 0 : index
      %c0_12 = arith.constant 0 : index
      %18 = vector.load %arg7[%c0_11, %c0_12] : memref<64x1xf32, #tpu.memory_space<vmem>>, vector<64x1xf32>
      %19 = tpu.concatenate %17, %18 in 1 : vector<64x1xf32>, vector<64x1xf32> -> vector<64x2xf32>
      %c0_13 = arith.constant 0 : index
      %c0_14 = arith.constant 0 : index
      %20 = vector.load %arg3[%c0_13, %c0_14] : memref<64x4xf32, #tpu.memory_space<vmem>>, vector<64x4xf32>
      %cst_15 = arith.constant dense<0.000000e+00> : vector<2x4xf32>
      %21 = tpu.matmul %19, %20, %cst_15 {dimension_numbers = #tpu.dot_dimension_numbers<[0], [0], [1], [1], [0, 1, 1, 1], [], []>} : vector<64x2xf32>, vector<64x4xf32>, vector<2x4xf32> -> vector<2x4xf32>
      %cst_16 = arith.constant 0.000000e+00 : f32
      %22 = vector.broadcast %cst_16 : f32 to vector<2x4xf32>
      %23 = arith.maximumf %21, %22 : vector<2x4xf32>
      %c0_17 = arith.constant 0 : index
      %c0_18 = arith.constant 0 : index
      %24 = vector.load %arg4[%c0_17, %c0_18] : memref<4x64xf32, #tpu.memory_space<vmem>>, vector<4x64xf32>
      %cst_19 = arith.constant dense<0.000000e+00> : vector<2x64xf32>
      %25 = tpu.matmul %23, %24, %cst_19 {dimension_numbers = #tpu.dot_dimension_numbers<[1], [0], [0], [1], [0, 0, 1, 1], [], []>} : vector<2x4xf32>, vector<4x64xf32>, vector<2x64xf32> -> vector<2x64xf32>
      %26 = vector.extract_strided_slice %25 {offsets = [0, 0], sizes = [1, 64], strides = [1, 1]} : vector<2x64xf32> to vector<1x64xf32>
      %27 = vector.extract_strided_slice %25 {offsets = [1, 0], sizes = [1, 64], strides = [1, 1]} : vector<2x64xf32> to vector<1x64xf32>
      %28 = arith.addf %26, %27 : vector<1x64xf32>
      %29 = arith.negf %28 : vector<1x64xf32>
      %30 = math.exp %29 : vector<1x64xf32>
      %cst_20 = arith.constant 1.000000e+00 : f32
      %31 = vector.broadcast %cst_20 : f32 to vector<1x64xf32>
      %32 = arith.addf %31, %30 : vector<1x64xf32>
      %33 = arith.divf %31, %32 : vector<1x64xf32>
      %c0_21 = arith.constant 0 : index
      %c0_22 = arith.constant 0 : index
      %c0_23 = arith.constant 0 : index
      %34 = vector.load %arg5[%c0_21, %c0_22, %c0_23] : memref<1x1x64xf32, #tpu.memory_space<vmem>>, vector<1x1x64xf32>
      %35 = vector.shape_cast %34 : vector<1x1x64xf32> to vector<1x64xf32>
      %36 = vector.shape_cast %33 : vector<1x64xf32> to vector<1x1x64xf32>
      tpu.vector_store %arg5[%c0_21, %c0_22, %c0_23], %36 {strides = array<i32>} : memref<1x1x64xf32, #tpu.memory_space<vmem>>, vector<1x1x64xf32>,
    } else {
    }
    return
  }
  func.func @transform_0(%arg0: i32, %arg1: i32) -> (i32, i32, i32) {
    %c0_i32 = arith.constant 0 : i32
    %c0_i32_0 = arith.constant 0 : i32
    return %arg0, %c0_i32, %arg1 : i32, i32, i32
  }
  func.func @transform_1(%arg0: i32, %arg1: i32) -> (i32, i32) {
    %c0_i32 = arith.constant 0 : i32
    %c0_i32_0 = arith.constant 0 : i32
    %c0_i32_1 = arith.constant 0 : i32
    return %c0_i32, %c0_i32_0 : i32, i32
  }
  func.func @transform_2(%arg0: i32, %arg1: i32) -> (i32, i32) {
    %c0_i32 = arith.constant 0 : i32
    %c0_i32_0 = arith.constant 0 : i32
    %c0_i32_1 = arith.constant 0 : i32
    return %c0_i32, %c0_i32_0 : i32, i32
  }
  func.func @transform_3(%arg0: i32, %arg1: i32) -> (i32, i32, i32) {
    %c0_i32 = arith.constant 0 : i32
    %c0_i32_0 = arith.constant 0 : i32
    %c0_i32_1 = arith.constant 0 : i32
    return %arg0, %c0_i32, %c0_i32_0 : i32, i32, i32
  }
}

</mosaic_0001>

<llo_original>
// kernel: channel_attention.1
$region0: #{channel_attention.1}
  #allocation0 [shape = 'u32[]', space=smem, size = 0x4, offset = 0x4, fixed_abs, tag = 'smem constant byte address 0x4 - core index']
  #allocation1 [shape = 'u32[144,128]{1,0:T(1,128)}', space=vmem, size = 0x12000, scoped, tag = 'internal scratch']
  #allocation2 [shape = 'f32[64,1]{1,0:T(8,128)}', space=vmem, size = 0x8000, scoped, tag = 'scratch operand']
  #allocation3 [shape = 'f32[64,1]{1,0:T(8,128)}', space=vmem, size = 0x8000, scoped, tag = 'scratch operand']
  %s0 = inlined_call_operand.vmem [shape: f32[2,64,256], index: 0, kind: input, shape index: {}]
  %s1 = inlined_call_operand.vmem [shape: f32[64,4], index: 1, kind: input, shape index: {}]
  %s2 = inlined_call_operand.vmem [shape: f32[4,64], index: 2, kind: input, shape index: {}]
  %s3 = inlined_call_operand.hbm [shape: f32[2,1,64], index: 3, kind: output, shape index: {}]
  %s4 = sld [smem:[#allocation0]]
  $region57: #{channel_attention.1} parent=0
    _
  %s6 = ssub.s32 1, %s4
  %s7 = scalar_select 0, %s6, %s4
  $region1: #{channel_attention.1} parent=0
    #allocation4 [shape = 'u8[1024]{0}', space=vmem, size = 0x400, scoped, tag = 'output window, operand 0']
    #allocation5 [shape = 's32[2]{0}', space=sflag, size = 0x8, scoped, tag = 'scoped memory for channel_attention.1']
    %8 = vsyncpa [#allocation5], 0
    %s9 = scalar_lea.sflag [#allocation5], 1
    %10 = vsyncpa %s9, 0
    loop: start=0, step=1, limit=4
    $region2: #{channel_attention.1} parent=1 // loop_pre_header
      _
    $region3: #{channel_attention.1} parent=1 // loop_header
      %s12 = sphi 0, %s16
      %p13 = scmp.ge.s32.totalorder %s12, 4
      %s19 = sphi 0, %s31
      %s20 = sphi 0, %s27
      %s21 = sphi 0, %s19
      %s22 = sphi 0, %s20
      %s23 = sphi 0, %s21
      %s24 = sphi 0, %s22
      %s36 = sphi 0, %s38
      %s39 = sphi 0, %s36
      %s40 = sphi 0, %s39
      %s56 = sphi 0, %s40
      %s60 = sphi 0, %s60
      %s62 = sphi 0, %s60
      %s63 = sphi 0, %s62
      %s77 = sphi 0, %s63
      %s81 = sphi 0, %s81
      %s83 = sphi 0, %s81
      %s84 = sphi 0, %s83
      %s98 = sphi 0, %s84
      %s104 = sphi 0, %s106
      %s107 = sphi 0, %s104
      %s108 = sphi 0, %s107
      %s124 = sphi 0, %s108
    $region4: #{channel_attention.1} parent=1 // loop_header_branch
      %15 = sbr.rel (%p13) target = $region8
    $region5: #{channel_attention.1} parent=1 // loop_body
      %s17 = ssub.s32 %s12, 1
      %s18 = ssub.s32 %s12, 2
      %s25 = sadd.s32 1, %s20
      %p26 = scmp.ge.s32.totalorder %s25, 1
      %s27 = scalar_select %p26, 0, %s25
      %s28 = sadd.s32 1, %s19
      %s29 = scalar_select %p26, %s28, %s19
      %p30 = scmp.ge.s32.totalorder %s29, 2
      %s31 = scalar_select %p30, 0, %s29
      %s32 = ssub.s32 %s19, %s31
      %s33 = ssub.s32 %s20, %s27
      %s34 = sor.u32 %s32, %s33
      %p35 = scmp.eq.s32.totalorder %s34, 0
      %s37 = sadd.s32 %s36, 1
      %s38 = scalar_select %p35, %s36, %s37
      %p41 = pneg %p35
      %p42 = scmp.eq.s32.totalorder %s12, 1
      %p43 = por %p41, %p42
      %p44 = scmp.ne.s32.totalorder %s36, %s39
      %p45 = scmp.eq.s32.totalorder %s12, 0
      %p46 = por %p44, %p45
      %p47 = scmp.ne.s32.totalorder %s36, %s39
      %p48 = scmp.eq.s32.totalorder %s17, 1
      %p49 = por %p47, %p48
      %p50 = scmp.ne.s32.totalorder %s39, %s40
      %p51 = scmp.eq.s32.totalorder %s17, 0
      %p52 = por %p50, %p51
      %p53 = scmp.ne.s32.totalorder %s39, %s40
      %p54 = scmp.eq.s32.totalorder %s18, 1
      %p55 = por %p53, %p54
      %p57 = scmp.ne.s32.totalorder %s40, %s56
      %p58 = scmp.eq.s32.totalorder %s18, 0
      %p59 = por %p57, %p58
      %s61 = sadd.s32 %s60, 1
      %p64 = scmp.eq.s32.totalorder %s12, 1
      %p65 = scmp.ne.s32.totalorder %s60, %s62
      %p66 = scmp.eq.s32.totalorder %s12, 0
      %p67 = por %p65, %p66
      %p68 = scmp.ne.s32.totalorder %s60, %s62
      %p69 = scmp.eq.s32.totalorder %s17, 1
      %p70 = por %p68, %p69
      %p71 = scmp.ne.s32.totalorder %s62, %s63
      %p72 = scmp.eq.s32.totalorder %s17, 0
      %p73 = por %p71, %p72
      %p74 = scmp.ne.s32.totalorder %s62, %s63
      %p75 = scmp.eq.s32.totalorder %s18, 1
      %p76 = por %p74, %p75
      %p78 = scmp.ne.s32.totalorder %s63, %s77
      %p79 = scmp.eq.s32.totalorder %s18, 0
      %p80 = por %p78, %p79
      %s82 = sadd.s32 %s81, 1
      %p85 = scmp.eq.s32.totalorder %s12, 1
      %p86 = scmp.ne.s32.totalorder %s81, %s83
      %p87 = scmp.eq.s32.totalorder %s12, 0
      %p88 = por %p86, %p87
      %p89 = scmp.ne.s32.totalorder %s81, %s83
      %p90 = scmp.eq.s32.totalorder %s17, 1
      %p91 = por %p89, %p90
      %p92 = scmp.ne.s32.totalorder %s83, %s84
      %p93 = scmp.eq.s32.totalorder %s17, 0
      %p94 = por %p92, %p93
      %p95 = scmp.ne.s32.totalorder %s83, %s84
      %p96 = scmp.eq.s32.totalorder %s18, 1
      %p97 = por %p95, %p96
      %p99 = scmp.ne.s32.totalorder %s84, %s98
      %p100 = scmp.eq.s32.totalorder %s18, 0
      %p101 = por %p99, %p100
      %s102 = ssub.s32 %s19, %s31
      %p103 = scmp.eq.s32.totalorder %s102, 0
      %s105 = sadd.s32 %s104, 1
      %s106 = scalar_select %p103, %s104, %s105
      %p109 = pneg %p103
      %p110 = scmp.eq.s32.totalorder %s12, 1
      %p111 = por %p109, %p110
      %p112 = scmp.ne.s32.totalorder %s104, %s107
      %p113 = scmp.eq.s32.totalorder %s12, 0
      %p114 = por %p112, %p113
      %p115 = scmp.ne.s32.totalorder %s104, %s107
      %p116 = scmp.eq.s32.totalorder %s17, 1
      %p117 = por %p115, %p116
      %p118 = scmp.ne.s32.totalorder %s107, %s108
      %p119 = scmp.eq.s32.totalorder %s17, 0
      %p120 = por %p118, %p119
      %p121 = scmp.ne.s32.totalorder %s107, %s108
      %p122 = scmp.eq.s32.totalorder %s18, 1
      %p123 = por %p121, %p122
      %p125 = scmp.ne.s32.totalorder %s108, %s124
      %p126 = scmp.eq.s32.totalorder %s18, 0
      %p127 = por %p125, %p126
      %p128 = scmp.le.s32.totalorder 1, %s12
      %p129 = scmp.lt.s32.totalorder %s12, 3
      %p130 = pnand %p128, %p129
      %p131 = pneg %p130
      // Predicated region
      $region9: #{channel_attention.1} parent=5 // pred_check
        _
      $region10: #{channel_attention.1} parent=5 // pred_check_branch
        %133 = sbr.rel (%p130) target = $region12
      $region11: #{channel_attention.1} parent=5 // pred_region
        %s134 = ssub.s32 %s12, 1
        // Predicated region
        $region13: #{channel_attention.1} parent=11 // pred_check
          %p135 = pneg %p73
        $region14: #{channel_attention.1} parent=11 // pred_check_branch
          %137 = sbr.rel (%p135) target = $region16
        $region15: #{channel_attention.1} parent=11 // pred_region
          _
        $region16: #{channel_attention.1} parent=11 // pred_fallthru
          _
        // Predicated region
        $region17: #{channel_attention.1} parent=11 // pred_check
          %p138 = pneg %p94
        $region18: #{channel_attention.1} parent=11 // pred_check_branch
          %140 = sbr.rel (%p138) target = $region20
        $region19: #{channel_attention.1} parent=11 // pred_region
          _
        $region20: #{channel_attention.1} parent=11 // pred_fallthru
          _
      $region12: #{channel_attention.1} parent=5 // pred_fallthru
        _
      %p141 = scmp.lt.s32.totalorder %s12, 2
      // Predicated region
      $region21: #{channel_attention.1} parent=5 // pred_check
        %p142 = pneg %p141
      $region22: #{channel_attention.1} parent=5 // pred_check_branch
        %144 = sbr.rel (%p142) target = $region24
      $region23: #{channel_attention.1} parent=5 // pred_region
        // Predicated region
        $region25: #{channel_attention.1} parent=23 // pred_check
          %p145 = pneg %p46
        $region26: #{channel_attention.1} parent=23 // pred_check_branch
          %147 = sbr.rel (%p145) target = $region28
        $region27: #{channel_attention.1} parent=23 // pred_region
          %s148 = smul.u32 2, %s20
          %p149 = scmp.lt.s32.totalorder %s19, 1
          %s150 = scalar_select %p149, %s19, 1
          %p151 = scmp.lt.s32.totalorder %s148, 1
          %s152 = scalar_select %p151, %s148, 1
          %s153 = smul.addr %s150, 16
          %s154 = sadd.s32 %s152, %s153
          %s155 = smul.addr %s154, 8
          %s156 = scalar_lea.vmem %s0, %s155
          %s157 = smul.u32 2, %s20
        $region28: #{channel_attention.1} parent=23 // pred_fallthru
          _
      $region24: #{channel_attention.1} parent=5 // pred_fallthru
        _
      %p158 = scmp.le.s32.totalorder 1, %s12
      %p159 = scmp.lt.s32.totalorder %s12, 3
      %p160 = pnand %p158, %p159
      %p161 = pneg %p160
      // Predicated region
      $region29: #{channel_attention.1} parent=5 // pred_check
        _
      $region30: #{channel_attention.1} parent=5 // pred_check_branch
        %163 = sbr.rel (%p160) target = $region32
      $region31: #{channel_attention.1} parent=5 // pred_region
        %s164 = ssub.s32 %s12, 1
        %s165 = smul.u32 2, %s22
        %p166 = scmp.lt.s32.totalorder %s21, 1
        %s167 = scalar_select %p166, %s21, 1
        %p168 = scmp.lt.s32.totalorder %s165, 1
        %s169 = scalar_select %p168, %s165, 1
        %s170 = smul.addr %s167, 16
        %s171 = sadd.s32 %s169, %s170
        %s172 = smul.addr %s171, 8
        %s173 = scalar_lea.vmem %s0, %s172
        %p174 = pneg %p52
        %p175 = pneg %p49
        %p176 = pneg %p73
        %p177 = pneg %p70
        %p178 = pneg %p94
        %p179 = pneg %p91
        %p180 = pneg %p120
        %p181 = pneg %p117
        %s182 = sand.u32 %s107, 1
        %s183 = scalar_lea.sflag [#allocation5], %s182
        %s184 = sand.u32 %s107, 1
        %s185 = scalar_lea.vmem [#allocation4], %s184
        %s186 = smul.u32 2, %s22
        %p187 = scmp.lt.s32.totalorder %s21, 1
        %s188 = scalar_select %p187, %s21, 1
        %p189 = scmp.lt.s32.totalorder %s186, 1
        %s190 = scalar_select %p189, %s186, 1
        %s191 = smul.addr %s188, 16
        %s192 = sadd.s32 %s190, %s191
        %s193 = smul.addr %s192, 8
        %s194 = scalar_lea.vmem %s0, %s193
        %s195 = smul.u32 2, %s22
        %v196 = vld [vmem:[%s194] sm:$0xff]
        %v197 = vld [vmem:[%s194 + $0x8] sm:$0xff]
        %v198 = vld [vmem:[%s194 + $0x10] sm:$0xff]
        %v199 = vld [vmem:[%s194 + $0x18] sm:$0xff]
        %v200 = vld [vmem:[%s194 + $0x20] sm:$0xff]
        %v201 = vld [vmem:[%s194 + $0x28] sm:$0xff]
        %v202 = vld [vmem:[%s194 + $0x30] sm:$0xff]
        %v203 = vld [vmem:[%s194 + $0x38] sm:$0xff]
        %v204 = vld [vmem:[%s194 + $0x40] sm:$0xff]
        %v205 = vld [vmem:[%s194 + $0x48] sm:$0xff]
        %v206 = vld [vmem:[%s194 + $0x50] sm:$0xff]
        %v207 = vld [vmem:[%s194 + $0x58] sm:$0xff]
        %v208 = vld [vmem:[%s194 + $0x60] sm:$0xff]
        %v209 = vld [vmem:[%s194 + $0x68] sm:$0xff]
        %v210 = vld [vmem:[%s194 + $0x70] sm:$0xff]
        %v211 = vld [vmem:[%s194 + $0x78] sm:$0xff]
        %v212 = vadd.f32 %v196, %v197
        %213 = vadd.xlane.f32.xlu0 %v212
        %v214 = vpop.xlane.xlu0 %213
        %v215 = vadd.f32 %v198, %v199
        %216 = vadd.xlane.f32.xlu0 %v215
        %v217 = vpop.xlane.xlu0 %216
        %v218 = vadd.f32 %v200, %v201
        %219 = vadd.xlane.f32.xlu0 %v218
        %v220 = vpop.xlane.xlu0 %219
        %v221 = vadd.f32 %v202, %v203
        %222 = vadd.xlane.f32.xlu0 %v221
        %v223 = vpop.xlane.xlu0 %222
        %v224 = vadd.f32 %v204, %v205
        %225 = vadd.xlane.f32.xlu0 %v224
        %v226 = vpop.xlane.xlu0 %225
        %v227 = vadd.f32 %v206, %v207
        %228 = vadd.xlane.f32.xlu0 %v227
        %v229 = vpop.xlane.xlu0 %228
        %v230 = vadd.f32 %v208, %v209
        %231 = vadd.xlane.f32.xlu0 %v230
        %v232 = vpop.xlane.xlu0 %231
        %v233 = vadd.f32 %v210, %v211
        %234 = vadd.xlane.f32.xlu0 %v233
        %v235 = vpop.xlane.xlu0 %234
        %v236 = vmax.f32 %v196, %v197
        %237 = vmax.xlane.f32.xlu0 %v236
        %v238 = vpop.xlane.xlu0 %237
        %v239 = vmax.f32 %v198, %v199
        %240 = vmax.xlane.f32.xlu0 %v239
        %v241 = vpop.xlane.xlu0 %240
        %v242 = vmax.f32 %v200, %v201
        %243 = vmax.xlane.f32.xlu0 %v242
        %v244 = vpop.xlane.xlu0 %243
        %v245 = vmax.f32 %v202, %v203
        %246 = vmax.xlane.f32.xlu0 %v245
        %v247 = vpop.xlane.xlu0 %246
        %v248 = vmax.f32 %v204, %v205
        %249 = vmax.xlane.f32.xlu0 %v248
        %v250 = vpop.xlane.xlu0 %249
        %v251 = vmax.f32 %v206, %v207
        %252 = vmax.xlane.f32.xlu0 %v251
        %v253 = vpop.xlane.xlu0 %252
        %v254 = vmax.f32 %v208, %v209
        %255 = vmax.xlane.f32.xlu0 %v254
        %v256 = vpop.xlane.xlu0 %255
        %v257 = vmax.f32 %v210, %v211
        %258 = vmax.xlane.f32.xlu0 %v257
        %v259 = vpop.xlane.xlu0 %258
        %p260 = scmp.eq.s32.totalorder %s22, 0
        // Predicated region
        $region33: #{channel_attention.1} parent=31 // pred_check
          %p261 = pneg %p260
        $region34: #{channel_attention.1} parent=31 // pred_check_branch
          %263 = sbr.rel (%p261) target = $region36
        $region35: #{channel_attention.1} parent=31 // pred_region
          %vm264 = vcmask 7168
          %265 = vst.msk [vmem:[#allocation2] sm:$0xff] %vm264, %v214
          %266 = vst.msk [vmem:[#allocation2 + $0x8] sm:$0xff] %vm264, %v217
          %267 = vst.msk [vmem:[#allocation2 + $0x10] sm:$0xff] %vm264, %v220
          %268 = vst.msk [vmem:[#allocation2 + $0x18] sm:$0xff] %vm264, %v223
          %269 = vst.msk [vmem:[#allocation2 + $0x20] sm:$0xff] %vm264, %v226
          %270 = vst.msk [vmem:[#allocation2 + $0x28] sm:$0xff] %vm264, %v229
          %271 = vst.msk [vmem:[#allocation2 + $0x30] sm:$0xff] %vm264, %v232
          %272 = vst.msk [vmem:[#allocation2 + $0x38] sm:$0xff] %vm264, %v235
          %273 = vst.msk [vmem:[#allocation3] sm:$0xff] %vm264, %v238
          %274 = vst.msk [vmem:[#allocation3 + $0x8] sm:$0xff] %vm264, %v241
          %275 = vst.msk [vmem:[#allocation3 + $0x10] sm:$0xff] %vm264, %v244
          %276 = vst.msk [vmem:[#allocation3 + $0x18] sm:$0xff] %vm264, %v247
          %277 = vst.msk [vmem:[#allocation3 + $0x20] sm:$0xff] %vm264, %v250
          %278 = vst.msk [vmem:[#allocation3 + $0x28] sm:$0xff] %vm264, %v253
          %279 = vst.msk [vmem:[#allocation3 + $0x30] sm:$0xff] %vm264, %v256
          %280 = vst.msk [vmem:[#allocation3 + $0x38] sm:$0xff] %vm264, %v259
        $region36: #{channel_attention.1} parent=31 // pred_fallthru
          _
        %p281 = scmp.gt.s32.totalorder %s22, 0
        // Predicated region
        $region37: #{channel_attention.1} parent=31 // pred_check
          %p282 = pneg %p281
        $region38: #{channel_attention.1} parent=31 // pred_check_branch
          %284 = sbr.rel (%p282) target = $region40
        $region39: #{channel_attention.1} parent=31 // pred_region
          %v285 = vld [vmem:[#allocation2] sm:$0xff]
          %v286 = vld [vmem:[#allocation2 + $0x8] sm:$0xff]
          %v287 = vld [vmem:[#allocation2 + $0x10] sm:$0xff]
          %v288 = vld [vmem:[#allocation2 + $0x18] sm:$0xff]
          %v289 = vld [vmem:[#allocation2 + $0x20] sm:$0xff]
          %v290 = vld [vmem:[#allocation2 + $0x28] sm:$0xff]
          %v291 = vld [vmem:[#allocation2 + $0x30] sm:$0xff]
          %v292 = vld [vmem:[#allocation2 + $0x38] sm:$0xff]
          %v293 = vadd.f32 %v285, %v214
          %v294 = vadd.f32 %v286, %v217
          %v295 = vadd.f32 %v287, %v220
          %v296 = vadd.f32 %v288, %v223
          %v297 = vadd.f32 %v289, %v226
          %v298 = vadd.f32 %v290, %v229
          %v299 = vadd.f32 %v291, %v232
          %v300 = vadd.f32 %v292, %v235
          %vm301 = vcmask 7168
          %302 = vst.msk [vmem:[#allocation2] sm:$0xff] %vm301, %v293
          %303 = vst.msk [vmem:[#allocation2 + $0x8] sm:$0xff] %vm301, %v294
          %304 = vst.msk [vmem:[#allocation2 + $0x10] sm:$0xff] %vm301, %v295
          %305 = vst.msk [vmem:[#allocation2 + $0x18] sm:$0xff] %vm301, %v296
          %306 = vst.msk [vmem:[#allocation2 + $0x20] sm:$0xff] %vm301, %v297
          %307 = vst.msk [vmem:[#allocation2 + $0x28] sm:$0xff] %vm301, %v298
          %308 = vst.msk [vmem:[#allocation2 + $0x30] sm:$0xff] %vm301, %v299
          %309 = vst.msk [vmem:[#allocation2 + $0x38] sm:$0xff] %vm301, %v300
          %v310 = vld [vmem:[#allocation3] sm:$0xff]
          %v311 = vld [vmem:[#allocation3 + $0x8] sm:$0xff]
          %v312 = vld [vmem:[#allocation3 + $0x10] sm:$0xff]
          %v313 = vld [vmem:[#allocation3 + $0x18] sm:$0xff]
          %v314 = vld [vmem:[#allocation3 + $0x20] sm:$0xff]
          %v315 = vld [vmem:[#allocation3 + $0x28] sm:$0xff]
          %v316 = vld [vmem:[#allocation3 + $0x30] sm:$0xff]
          %v317 = vld [vmem:[#allocation3 + $0x38] sm:$0xff]
          %v318 = vmax.f32 %v310, %v238
          %v319 = vmax.f32 %v311, %v241
          %v320 = vmax.f32 %v312, %v244
          %v321 = vmax.f32 %v313, %v247
          %v322 = vmax.f32 %v314, %v250
          %v323 = vmax.f32 %v315, %v253
          %v324 = vmax.f32 %v316, %v256
          %v325 = vmax.f32 %v317, %v259
          %326 = vst.msk [vmem:[#allocation3] sm:$0xff] %vm301, %v318
          %327 = vst.msk [vmem:[#allocation3 + $0x8] sm:$0xff] %vm301, %v319
          %328 = vst.msk [vmem:[#allocation3 + $0x10] sm:$0xff] %vm301, %v320
          %329 = vst.msk [vmem:[#allocation3 + $0x18] sm:$0xff] %vm301, %v321
          %330 = vst.msk [vmem:[#allocation3 + $0x20] sm:$0xff] %vm301, %v322
          %331 = vst.msk [vmem:[#allocation3 + $0x28] sm:$0xff] %vm301, %v323
          %332 = vst.msk [vmem:[#allocation3 + $0x30] sm:$0xff] %vm301, %v324
          %333 = vst.msk [vmem:[#allocation3 + $0x38] sm:$0xff] %vm301, %v325
        $region40: #{channel_attention.1} parent=31 // pred_fallthru
          _
        // Predicated region
        $region41: #{channel_attention.1} parent=31 // pred_check
          %p334 = pneg %p260
        $region42: #{channel_attention.1} parent=31 // pred_check_branch
          %336 = sbr.rel (%p334) target = $region44
        $region43: #{channel_attention.1} parent=31 // pred_region
          %v337 = vld [vmem:[#allocation2] sm:$0xff]
          %v338 = vld [vmem:[#allocation2 + $0x8] sm:$0xff]
          %v339 = vld [vmem:[#allocation2 + $0x10] sm:$0xff]
          %v340 = vld [vmem:[#allocation2 + $0x18] sm:$0xff]
          %v341 = vld [vmem:[#allocation2 + $0x20] sm:$0xff]
          %v342 = vld [vmem:[#allocation2 + $0x28] sm:$0xff]
          %v343 = vld [vmem:[#allocation2 + $0x30] sm:$0xff]
          %v344 = vld [vmem:[#allocation2 + $0x38] sm:$0xff]
          %v345 = vmul.f32 %v337, 0.00390625
          %v346 = vmul.f32 %v338, 0.00390625
          %v347 = vmul.f32 %v339, 0.00390625
          %v348 = vmul.f32 %v340, 0.00390625
          %v349 = vmul.f32 %v341, 0.00390625
          %v350 = vmul.f32 %v342, 0.00390625
          %v351 = vmul.f32 %v343, 0.00390625
          %v352 = vmul.f32 %v344, 0.00390625
          %v353 = vld [vmem:[#allocation3] sm:$0xff]
          %v354 = vld [vmem:[#allocation3 + $0x8] sm:$0xff]
          %v355 = vld [vmem:[#allocation3 + $0x10] sm:$0xff]
          %v356 = vld [vmem:[#allocation3 + $0x18] sm:$0xff]
          %v357 = vld [vmem:[#allocation3 + $0x20] sm:$0xff]
          %v358 = vld [vmem:[#allocation3 + $0x28] sm:$0xff]
          %v359 = vld [vmem:[#allocation3 + $0x30] sm:$0xff]
          %v360 = vld [vmem:[#allocation3 + $0x38] sm:$0xff]
          %369 = vrot.lane.b32.xlu0 %v353, 1
          %v370 = vpop.permute.xlu0 %369
          %371 = vrot.lane.b32.xlu0 %v354, 1
          %v372 = vpop.permute.xlu0 %371
          %373 = vrot.lane.b32.xlu0 %v355, 1
          %v374 = vpop.permute.xlu0 %373
          %375 = vrot.lane.b32.xlu0 %v356, 1
          %v376 = vpop.permute.xlu0 %375
          %377 = vrot.lane.b32.xlu0 %v357, 1
          %v378 = vpop.permute.xlu0 %377
          %379 = vrot.lane.b32.xlu0 %v358, 1
          %v380 = vpop.permute.xlu0 %379
          %381 = vrot.lane.b32.xlu0 %v359, 1
          %v382 = vpop.permute.xlu0 %381
          %383 = vrot.lane.b32.xlu0 %v360, 1
          %v384 = vpop.permute.xlu0 %383
          %vm393 = vcmask 7168
          %v394 = vsel %vm393, %v345, %v370
          %v395 = vsel %vm393, %v346, %v372
          %v396 = vsel %vm393, %v347, %v374
          %v397 = vsel %vm393, %v348, %v376
          %v398 = vsel %vm393, %v349, %v378
          %v399 = vsel %vm393, %v350, %v380
          %v400 = vsel %vm393, %v351, %v382
          %v401 = vsel %vm393, %v352, %v384
          %v402 = vld [vmem:[%s1] sm:$0xff]
          %v403 = vld [vmem:[%s1 + $0x8] sm:$0xff]
          %v404 = vld [vmem:[%s1 + $0x10] sm:$0xff]
          %v405 = vld [vmem:[%s1 + $0x18] sm:$0xff]
          %v406 = vld [vmem:[%s1 + $0x20] sm:$0xff]
          %v407 = vld [vmem:[%s1 + $0x28] sm:$0xff]
          %v408 = vld [vmem:[%s1 + $0x30] sm:$0xff]
          %v409 = vld [vmem:[%s1 + $0x38] sm:$0xff]
          %410 = vxpose.xlu0.b32.start [1/16] %v394, 128
          %411 = vxpose.xlu0.b32.cont [2/16] %v395, 128
          %412 = vxpose.xlu0.b32.cont [3/16] %v396, 128
          %413 = vxpose.xlu0.b32.cont [4/16] %v397, 128
          %414 = vxpose.xlu0.b32.cont [5/16] %v398, 128
          %415 = vxpose.xlu0.b32.cont [6/16] %v399, 128
          %416 = vxpose.xlu0.b32.cont [7/16] %v400, 128
          %417 = vxpose.xlu0.b32.cont [8/16] %v401, 128
          %418 = vxpose.xlu0.b32.cont [9/16] 0.0, 128
          %419 = vxpose.xlu0.b32.cont [10/16] 0.0, 128
          %420 = vxpose.xlu0.b32.cont [11/16] 0.0, 128
          %421 = vxpose.xlu0.b32.cont [12/16] 0.0, 128
          %422 = vxpose.xlu0.b32.cont [13/16] 0.0, 128
          %423 = vxpose.xlu0.b32.cont [14/16] 0.0, 128
          %424 = vxpose.xlu0.b32.cont [15/16] 0.0, 128
          %425 = vxpose.xlu0.b32.end [16/16] 0.0, 128
          %v426 = vpop.trf.xlu0
          %v427 = vpop.trf.xlu0
          %v428 = vpop.trf.xlu0
          %v429 = vpop.trf.xlu0
          %v430 = vpop.trf.xlu0
          %v431 = vpop.trf.xlu0
          %v432 = vpop.trf.xlu0
          %v433 = vpop.trf.xlu0
          %v434 = vpop.trf.xlu0
          %v435 = vpop.trf.xlu0
          %v436 = vpop.trf.xlu0
          %v437 = vpop.trf.xlu0
          %v438 = vpop.trf.xlu0
          %v439 = vpop.trf.xlu0
          %v440 = vpop.trf.xlu0
          %v441 = vpop.trf.xlu0
          %vm442 = vcmask 523264
          %v444 = vsel %vm442, %v426, 0
          %446 = vmatprep.subr.mxu0 0.0
          %447 = vmatpush1.msra.mxu0 %v402
          %448 = vmatprep.subr.mxu0 0.0
          %449 = vmatpush1.msra.mxu0 %v403
          %450 = vmatprep.subr.mxu0 0.0
          %451 = vmatpush1.msra.mxu0 %v404
          %452 = vmatprep.subr.mxu0 0.0
          %453 = vmatpush1.msra.mxu0 %v405
          %454 = vmatprep.subr.mxu0 0.0
          %455 = vmatpush1.msra.mxu0 %v406
          %456 = vmatprep.subr.mxu0 0.0
          %457 = vmatpush1.msra.mxu0 %v407
          %458 = vmatprep.subr.mxu0 0.0
          %459 = vmatpush1.msra.mxu0 %v408
          %460 = vmatprep.subr.mxu0 0.0
          %461 = vmatpush1.msra.mxu0 %v409
          %462 = vmatprep.subr.mxu0 0.0
          %463 = vmatpush1.msra.mxu0 0.0
          %464 = vmatprep.subr.mxu0 0.0
          %465 = vmatpush1.msra.mxu0 0.0
          %466 = vmatprep.subr.mxu0 0.0
          %467 = vmatpush1.msra.mxu0 0.0
          %468 = vmatprep.subr.mxu0 0.0
          %469 = vmatpush1.msra.mxu0 0.0
          %470 = vmatprep.subr.mxu0 0.0
          %471 = vmatpush1.msra.mxu0 0.0
          %472 = vmatprep.subr.mxu0 0.0
          %473 = vmatpush1.msra.mxu0 0.0
          %474 = vmatprep.subr.mxu0 0.0
          %475 = vmatpush1.msra.mxu0 0.0
          %476 = vmatprep.subr.mxu0 0.0
          %477 = vmatpush1.msra.mxu0 0.0
          %478 = vmatprep.subr.mxu0 0.0
          %479 = vmatpush1.msra.mxu0 0.0
          %480 = vmatprep.subr.mxu0 0.0
          %481 = vmatpush1.msra.mxu0 0.0
          %482 = vmatprep.subr.mxu0 0.0
          %483 = vmatpush1.msra.mxu0 0.0
          %484 = vmatprep.subr.mxu0 0.0
          %485 = vmatpush1.msra.mxu0 0.0
          %486 = vmatprep.subr.mxu0 0.0
          %487 = vmatpush1.msra.mxu0 0.0
          %488 = vmatprep.subr.mxu0 0.0
          %489 = vmatpush1.msra.mxu0 0.0
          %490 = vmatprep.subr.mxu0 0.0
          %491 = vmatpush1.msra.mxu0 0.0
          %492 = vmatprep.subr.mxu0 0.0
          %493 = vmatpush1.msra.mxu0 0.0
          %494 = vmatprep.subr.mxu0 0.0
          %495 = vmatpush1.msra.mxu0 0.0
          %496 = vmatprep.subr.mxu0 0.0
          %497 = vmatpush1.msra.mxu0 0.0
          %498 = vmatprep.subr.mxu0 0.0
          %499 = vmatpush1.msra.mxu0 0.0
          %500 = vmatprep.subr.mxu0 0.0
          %501 = vmatpush1.msra.mxu0 0.0
          %502 = vmatprep.subr.mxu0 0.0
          %503 = vmatpush1.msra.mxu0 0.0
          %504 = vmatprep.subr.mxu0 0.0
          %505 = vmatpush1.msra.mxu0 0.0
          %506 = vmatprep.subr.mxu0 0.0
          %507 = vmatpush1.msra.mxu0 0.0
          %508 = vmatprep.subr.mxu0 0.0
          %509 = vmatpush1.msra.mxu0 0.0
          %510 = vmatprep.mubr.f32.mxu0 0.0
          %511 = vmatmul.mubr.f32.gmra.mrb[0].mxu0 %v444
          %v512 = vpop.f32.mrb[0].mxu0
          %v513 = vadd.f32 0.0, %v512
          %v514 = vpop.f32.mrb[0].mxu0
          %515 = vdwg.mxu0
          %v516 = vmax.f32 %v513, 0.0
          %v517 = vld [vmem:[%s2] sm:$0xf]
          %vm518 = vcmask 31744
          %v520 = vsel %vm518, %v516, 0
          %vm522 = vcmask 1043456
          %v524 = vsel %vm522, %v517, 0
          %526 = vmatprep.subr.mxu0 0.0
          %527 = vmatpush1.msra.mxu0 %v524
          %528 = vmatprep.subr.mxu0 0.0
          %529 = vmatpush1.msra.mxu0 0.0
          %530 = vmatprep.subr.mxu0 0.0
          %531 = vmatpush1.msra.mxu0 0.0
          %532 = vmatprep.subr.mxu0 0.0
          %533 = vmatpush1.msra.mxu0 0.0
          %534 = vmatprep.subr.mxu0 0.0
          %535 = vmatpush1.msra.mxu0 0.0
          %536 = vmatprep.subr.mxu0 0.0
          %537 = vmatpush1.msra.mxu0 0.0
          %538 = vmatprep.subr.mxu0 0.0
          %539 = vmatpush1.msra.mxu0 0.0
          %540 = vmatprep.subr.mxu0 0.0
          %541 = vmatpush1.msra.mxu0 0.0
          %542 = vmatprep.subr.mxu0 0.0
          %543 = vmatpush1.msra.mxu0 0.0
          %544 = vmatprep.subr.mxu0 0.0
          %545 = vmatpush1.msra.mxu0 0.0
          %546 = vmatprep.subr.mxu0 0.0
          %547 = vmatpush1.msra.mxu0 0.0
          %548 = vmatprep.subr.mxu0 0.0
          %549 = vmatpush1.msra.mxu0 0.0
          %550 = vmatprep.subr.mxu0 0.0
          %551 = vmatpush1.msra.mxu0 0.0
          %552 = vmatprep.subr.mxu0 0.0
          %553 = vmatpush1.msra.mxu0 0.0
          %554 = vmatprep.subr.mxu0 0.0
          %555 = vmatpush1.msra.mxu0 0.0
          %556 = vmatprep.subr.mxu0 0.0
          %557 = vmatpush1.msra.mxu0 0.0
          %558 = vmatprep.subr.mxu0 0.0
          %559 = vmatpush1.msra.mxu0 0.0
          %560 = vmatprep.subr.mxu0 0.0
          %561 = vmatpush1.msra.mxu0 0.0
          %562 = vmatprep.subr.mxu0 0.0
          %563 = vmatpush1.msra.mxu0 0.0
          %564 = vmatprep.subr.mxu0 0.0
          %565 = vmatpush1.msra.mxu0 0.0
          %566 = vmatprep.subr.mxu0 0.0
          %567 = vmatpush1.msra.mxu0 0.0
          %568 = vmatprep.subr.mxu0 0.0
          %569 = vmatpush1.msra.mxu0 0.0
          %570 = vmatprep.subr.mxu0 0.0
          %571 = vmatpush1.msra.mxu0 0.0
          %572 = vmatprep.subr.mxu0 0.0
          %573 = vmatpush1.msra.mxu0 0.0
          %574 = vmatprep.subr.mxu0 0.0
          %575 = vmatpush1.msra.mxu0 0.0
          %576 = vmatprep.subr.mxu0 0.0
          %577 = vmatpush1.msra.mxu0 0.0
          %578 = vmatprep.subr.mxu0 0.0
          %579 = vmatpush1.msra.mxu0 0.0
          %580 = vmatprep.subr.mxu0 0.0
          %581 = vmatpush1.msra.mxu0 0.0
          %582 = vmatprep.subr.mxu0 0.0
          %583 = vmatpush1.msra.mxu0 0.0
          %584 = vmatprep.subr.mxu0 0.0
          %585 = vmatpush1.msra.mxu0 0.0
          %586 = vmatprep.subr.mxu0 0.0
          %587 = vmatpush1.msra.mxu0 0.0
          %588 = vmatprep.subr.mxu0 0.0
          %589 = vmatpush1.msra.mxu0 0.0
          %590 = vmatprep.mubr.f32.mxu0 0.0
          %591 = vmatmul.mubr.f32.gmra.mrb[0].mxu0 %v520
          %v592 = vpop.f32.mrb[0].mxu0
          %v593 = vadd.f32 0.0, %v592
          %v594 = vpop.f32.mrb[0].mxu0
          %595 = vdwg.mxu0
          %v597 = vrot.slane %v593, 1
          %v599 = vadd.f32 %v593, %v597
          %v600 = vxor.u32 %v599, 2147483648
          %v601 = vmul.f32 %v600, 1.442695
          %v602 = vpow.pop %v601
          %v603 = vadd.f32 %v602, 1.0
          %v604 = vrcp.pop %v603
          %v605 = vmul.f32 1.0, %v604
          %vm606 = vcmask 516096
          %607 = vst.msk [vmem:[%s185] sm:$0x1] %vm606, %v605
        $region44: #{channel_attention.1} parent=31 // pred_fallthru
          _
        %s608 = sand.u32 %s107, 1
        %s609 = scalar_lea.sflag [#allocation5], %s608
        %s610 = sand.u32 %s107, 1
        %s611 = scalar_lea.vmem [#allocation4], %s610
        // Predicated region
        $region45: #{channel_attention.1} parent=31 // pred_check
          %p612 = pneg %p117
        $region46: #{channel_attention.1} parent=31 // pred_check_branch
          %614 = sbr.rel (%p612) target = $region48
        $region47: #{channel_attention.1} parent=31 // pred_region
          %s616 = ssub.s32 16, 16
          %617 = vsyncadd %s609, %s616
          %s618 = smul.addr %s21, 16
          %s619 = scalar_lea.hbm %s3, %s618
          %s621 = sshll.u32 %s611, 4
          %s622 = int_to_ptr.vmem [resolvable:$true] %s621
          %624 = dma.vmem_to_hbm [thread:$0]  %s622, 16, %s619, %s609
        $region48: #{channel_attention.1} parent=31 // pred_fallthru
          _
      $region32: #{channel_attention.1} parent=5 // pred_fallthru
        _
      %p625 = scmp.le.s32.totalorder 2, %s12
      // Predicated region
      $region49: #{channel_attention.1} parent=5 // pred_check
        %p626 = pneg %p625
      $region50: #{channel_attention.1} parent=5 // pred_check_branch
        %628 = sbr.rel (%p626) target = $region52
      $region51: #{channel_attention.1} parent=5 // pred_region
        %s629 = ssub.s32 %s12, 2
        // Predicated region
        $region53: #{channel_attention.1} parent=51 // pred_check
          %p630 = pneg %p123
        $region54: #{channel_attention.1} parent=51 // pred_check_branch
          %632 = sbr.rel (%p630) target = $region56
        $region55: #{channel_attention.1} parent=51 // pred_region
          %s633 = sand.u32 %s108, 1
          %s634 = scalar_lea.sflag [#allocation5], %s633
          %s635 = sand.u32 %s108, 1
          %s636 = scalar_lea.vmem [#allocation4], %s635
          %637 = dma.done %s634, 16
        $region56: #{channel_attention.1} parent=51 // pred_fallthru
          _
      $region52: #{channel_attention.1} parent=5 // pred_fallthru
        _
    $region6: #{channel_attention.1} parent=1 // loop_footer
      %s16 = sadd.s32 1, %s12
    $region7: #{channel_attention.1} parent=1 // loop_footer_branch
      %11 = sbr.rel target = $region3
    $region8: #{channel_attention.1} parent=1 // loop_exit
      _
    %638 = vsyncpa [#allocation5], 1
    %s639 = scalar_lea.sflag [#allocation5], 1
    %640 = vsyncpa %s639, 1

</llo_original>
